<compile_context>
chip_gen: v5e
topology: v5e:2x2
jax: 0.10.0
libtpu: 0.0.40
codegen_flags: <defaults>
</compile_context>

<pallas_src>
import functools

import jax
import jax.numpy as jnp
from jax.experimental import pallas as pl
from jax.experimental.pallas import tpu as pltpu

_VMEM_LIMIT = 32 * 1024 * 1024  # safe on v5e/v6e/v7x; working set is a few MiB


def _round_up(x, m):
    return ((x + m - 1) // m) * m


def _pad2(a, rows, cols):
    pr, pc = rows - a.shape[0], cols - a.shape[1]
    if pr or pc:
        a = jnp.pad(a, ((0, pr), (0, pc)))
    return a


def _pad_row(v, cols):
    pc = cols - v.shape[0]
    if pc:
        v = jnp.pad(v, ((0, pc),))
    return v.reshape(1, cols)


def _choose_tiles(B, D_in, D_out):
    """Lane-dense, MXU-friendly tiles with minimal batch-padding waste."""
    if B <= 512:
        tm = _round_up(B, 8)                      # whole batch in one M block
    else:
        tm, best_waste = 512, (-B) % 512          # minimize Bp - B, prefer big tm
        for cand in range(512, 7, -8):
            waste = (-B) % cand
            if waste < best_waste:
                tm, best_waste = cand, waste
    tn = min(512, _round_up(D_out, 128))
    tk = min(1024, _round_up(D_in, 128))
    # v7x has 2 TensorCores: avoid collapsing every parallel axis to 1 block.
    if B <= tm and D_out <= tn and D_out > 128:
        tn = _round_up((D_out + 1) // 2, 128)
    return tm, tn, tk


# --------------------------------------------------------------------------
# Linear + bias + ReLU  (grid = (M//tm, N//tn, K//tk); accumulate into o_ref)
# --------------------------------------------------------------------------
def _linear_relu_kernel(x_ref, w_ref, b_ref, o_ref):
    k = pl.program_id(2)

    @pl.when(k == 0)
    def _():
        o_ref[...] = jnp.zeros_like(o_ref)

    # x: (tm, tk) bf16, w: (tn, tk) bf16 (native nn.Linear layout) ->
    # contract the shared D_in axis; f32 accumulation in the MXU.
    o_ref[...] += jax.lax.dot_general(
        x_ref[...], w_ref[...],
        dimension_numbers=(((1,), (1,)), ((), ())),
        preferred_element_type=jnp.float32)

    @pl.when(k == pl.num_programs(2) - 1)
    def _():
        o_ref[...] = jnp.maximum(o_ref[...] + b_ref[...], 0.0).astype(o_ref.dtype)


def _matmul_relu_padded(x, weight, bias, tm, tn, tk):
    """Returns ReLU(x @ W^T + b) on the padded (Bp, Np) grid, float32."""
    B, D_in = x.shape
    D_out = weight.shape[0]
    Bp = _round_up(B, tm)
    Np = _round_up(D_out, tn)
    Kp = _round_up(D_in, tk)

    x_p = _pad2(x, Bp, Kp).astype(jnp.bfloat16)
    w_p = _pad2(weight, Np, Kp).astype(jnp.bfloat16)
    b_p = _pad_row(bias, Np).astype(jnp.float32)

    grid = (Bp // tm, Np // tn, Kp // tk)
    return pl.pallas_call(
        _linear_relu_kernel,
        out_shape=jax.ShapeDtypeStruct((Bp, Np), jnp.float32),
        grid_spec=pltpu.PrefetchScalarGridSpec(
            num_scalar_prefetch=0,
            grid=grid,
            in_specs=[
                pl.BlockSpec((tm, tk), lambda i, j, k: (i, k)),
                pl.BlockSpec((tn, tk), lambda i, j, k: (j, k)),
                pl.BlockSpec((1, tn), lambda i, j, k: (0, j)),
            ],
            out_specs=pl.BlockSpec((tm, tn), lambda i, j, k: (i, j)),
        ),
        compiler_params=pltpu.CompilerParams(
            dimension_semantics=("parallel", "parallel", "arbitrary"),
            vmem_limit_bytes=_VMEM_LIMIT),
    )(x_p, w_p, b_p)


# --------------------------------------------------------------------------
# BatchNorm1d — pass 1: per-feature sum / sum-of-squares (partial statistics,
# padded batch rows masked out).  grid = (N//tn, M//tm), M last = reduction.
# --------------------------------------------------------------------------
def _bn_stats_kernel(y_ref, sum_ref, ssq_ref, *, batch, tm):
    m = pl.program_id(1)

    @pl.when(m == 0)
    def _():
        sum_ref[...] = jnp.zeros_like(sum_ref)
        ssq_ref[...] = jnp.zeros_like(ssq_ref)

    y = y_ref[...]
    row = jax.lax.broadcasted_iota(jnp.int32, y.shape, 0) + m * tm
    y = jnp.where(row < batch, y, 0.0)                 # exclude padded rows
    sum_ref[...] += jnp.sum(y, axis=0, keepdims=True)
    ssq_ref[...] += jnp.sum(y * y, axis=0, keepdims=True)


# --------------------------------------------------------------------------
# BatchNorm1d — pass 2: normalize + affine.  grid = (M//tm, N//tn), parallel.
# --------------------------------------------------------------------------
def _bn_norm_kernel(y_ref, sum_ref, ssq_ref, g_ref, be_ref, o_ref, *, batch, eps):
    inv_b = 1.0 / batch
    mean = sum_ref[...] * inv_b
    var = jnp.maximum(ssq_ref[...] * inv_b - mean * mean, 0.0)   # biased var
    inv = jax.lax.rsqrt(var + eps)
    o_ref[...] = ((y_ref[...] - mean) * (inv * g_ref[...]) + be_ref[...]).astype(
        o_ref.dtype)


# --------------------------------------------------------------------------
# Host wrapper
# --------------------------------------------------------------------------
def linear_layer_forward(x, weight, bias, *, gamma=None, beta=None,
                         use_bn=False, eps=1e-5):
    """Forward pass of LinearLayer.

    x:      (B, D_in)  float32
    weight: (D_out, D_in)  (native PyTorch nn.Linear layout, no transpose)
    bias:   (D_out,)
    gamma/beta: (D_out,) BatchNorm1d affine params (only if use_bn)
    """
    B, D_in = x.shape
    D_out = weight.shape[0]
    tm, tn, tk = _choose_tiles(B, D_in, D_out)

    y_p = _matmul_relu_padded(x, weight, bias, tm, tn, tk)   # (Bp, Np) f32
    if not use_bn:
        return y_p[:B, :D_out]

    Bp, Np = y_p.shape

    # Pass 1: partial batch statistics (sum, sum of squares) per feature.
    sums, ssqs = pl.pallas_call(
        functools.partial(_bn_stats_kernel, batch=B, tm=tm),
        out_shape=(jax.ShapeDtypeStruct((1, Np), jnp.float32),
                   jax.ShapeDtypeStruct((1, Np), jnp.float32)),
        grid_spec=pltpu.PrefetchScalarGridSpec(
            num_scalar_prefetch=0,
            grid=(Np // tn, Bp // tm),
            in_specs=[pl.BlockSpec((tm, tn), lambda j, i: (i, j))],
            out_specs=[pl.BlockSpec((1, tn), lambda j, i: (0, j)),
                       pl.BlockSpec((1, tn), lambda j, i: (0, j))],
        ),
        compiler_params=pltpu.CompilerParams(
            dimension_semantics=("parallel", "arbitrary"),
            vmem_limit_bytes=_VMEM_LIMIT),
    )(y_p)

    # Pass 2: normalize + affine.
    g_p = _pad_row(gamma, Np).astype(jnp.float32)
    be_p = _pad_row(beta, Np).astype(jnp.float32)
    out_p = pl.pallas_call(
        functools.partial(_bn_norm_kernel, batch=B, eps=eps),
        out_shape=jax.ShapeDtypeStruct((Bp, Np), jnp.float32),
        grid_spec=pltpu.PrefetchScalarGridSpec(
            num_scalar_prefetch=0,
            grid=(Bp // tm, Np // tn),
            in_specs=[
                pl.BlockSpec((tm, tn), lambda i, j: (i, j)),
                pl.BlockSpec((1, tn), lambda i, j: (0, j)),
                pl.BlockSpec((1, tn), lambda i, j: (0, j)),
                pl.BlockSpec((1, tn), lambda i, j: (0, j)),
                pl.BlockSpec((1, tn), lambda i, j: (0, j)),
            ],
            out_specs=pl.BlockSpec((tm, tn), lambda i, j: (i, j)),
        ),
        compiler_params=pltpu.CompilerParams(
            dimension_semantics=("parallel", "parallel"),
            vmem_limit_bytes=_VMEM_LIMIT),
    )(y_p, sums, ssqs, g_p, be_p)
    return out_p[:B, :D_out]


if __name__ == "__main__":
    # Small deterministic setup consistent with the module.  B not a multiple
    # of 8 exercises the batch-padding / BN row-masking path.
    B, D_in, D_out = 6, 32, 64
    key = jax.random.PRNGKey(0)
    kx, kw, kb, kg, kbe = jax.random.split(key, 5)

    x = jax.random.normal(kx, (B, D_in), dtype=jnp.float32)
    # nn.Linear default init: U(-1/sqrt(D_in), 1/sqrt(D_in))
    bound = 1.0 / (D_in ** 0.5)
    weight = jax.random.uniform(kw, (D_out, D_in), minval=-bound, maxval=bound,
                                dtype=jnp.float32)
    bias = jax.random.uniform(kb, (D_out,), minval=-bound, maxval=bound,
                              dtype=jnp.float32)
    gamma = 1.0 + 0.1 * jax.random.normal(kg, (D_out,), dtype=jnp.float32)
    beta = 0.1 * jax.random.normal(kbe, (D_out,), dtype=jnp.float32)

    # use_bn=False path (module default)
    out = linear_layer_forward(x, weight, bias, use_bn=False)
    jax.block_until_ready(out)

    # use_bn=True path (training-mode batch statistics)
    out_bn = linear_layer_forward(x, weight, bias, gamma=gamma, beta=beta,
                                  use_bn=True)
    jax.block_until_ready(out_bn)

    # Reference checks.  Matmul operands are bf16 (f32 accumulation), so the
    # comparison vs the f32 reference uses a loosened tolerance.
    ref = jnp.maximum(x @ weight.T + bias, 0.0)
    assert jnp.allclose(out, ref, atol=2e-2, rtol=2e-2), "linear+relu mismatch"

    # BN reference built from the kernel's own f32 activations so this check
    # isolates the BN stats/normalize path from bf16 matmul rounding.
    m = out.mean(axis=0, keepdims=True)
    v = ((out - m) ** 2).mean(axis=0, keepdims=True)
    ref_bn = (out - m) * jax.lax.rsqrt(v + 1e-5) * gamma + beta
    assert jnp.allclose(out_bn, ref_bn, atol=1e-3, rtol=1e-3), "bn mismatch"

    print("KERNEL_OK")
</pallas_src>

<mosaic_0001>
module attributes {stable_mosaic.version = 11 : i64} {
  func.func @_linear_relu_kernel(%arg0: i32, %arg1: i32, %arg2: i32, %arg3: memref<8x128xbf16, #tpu.memory_space<vmem>>, %arg4: memref<128x128xbf16, #tpu.memory_space<vmem>>, %arg5: memref<1x128xf32, #tpu.memory_space<vmem>>, %arg6: memref<8x128xf32, #tpu.memory_space<vmem>>) attributes {dimension_semantics = [#tpu.dimension_semantics<parallel>, #tpu.dimension_semantics<parallel>, #tpu.dimension_semantics<arbitrary>], iteration_bounds = array<i64: 1, 1, 1>, scalar_prefetch = 0 : i64, scratch_operands = 0 : i64, tpu.core_type = #tpu.core_type<tc>, window_params = [{transform_indices = @transform_0, window_bounds = array<i64: 8, 128>}, {transform_indices = @transform_1, window_bounds = array<i64: 128, 128>}, {transform_indices = @transform_2, window_bounds = array<i64: 1, 128>}, {transform_indices = @transform_3, window_bounds = array<i64: 8, 128>}]} {
    %c0_i32 = arith.constant 0 : i32
    %0 = arith.cmpi eq, %arg2, %c0_i32 : i32
    %1 = arith.extui %0 : i1 to i32
    %c0_i32_0 = arith.constant 0 : i32
    %2 = arith.cmpi ne, %1, %c0_i32_0 : i32
    scf.if %2 {
      %cst_10 = arith.constant 0.000000e+00 : f32
      %12 = vector.broadcast %cst_10 : f32 to vector<8x128xf32>
      %c0_11 = arith.constant 0 : index
      %c0_12 = arith.constant 0 : index
      %13 = vector.load %arg6[%c0_11, %c0_12] : memref<8x128xf32, #tpu.memory_space<vmem>>, vector<8x128xf32>
      tpu.vector_store %arg6[%c0_11, %c0_12], %12 {strides = array<i32>} : memref<8x128xf32, #tpu.memory_space<vmem>>, vector<8x128xf32>,
    } else {
    }
    %c0 = arith.constant 0 : index
    %c0_1 = arith.constant 0 : index
    %3 = vector.load %arg6[%c0, %c0_1] : memref<8x128xf32, #tpu.memory_space<vmem>>, vector<8x128xf32>
    %c0_2 = arith.constant 0 : index
    %c0_3 = arith.constant 0 : index
    %4 = vector.load %arg3[%c0_2, %c0_3] : memref<8x128xbf16, #tpu.memory_space<vmem>>, vector<8x128xbf16>
    %c0_4 = arith.constant 0 : index
    %c0_5 = arith.constant 0 : index
    %5 = vector.load %arg4[%c0_4, %c0_5] : memref<128x128xbf16, #tpu.memory_space<vmem>>, vector<128x128xbf16>
    %cst = arith.constant dense<0.000000e+00> : vector<8x128xf32>
    %6 = tpu.matmul %4, %5, %cst {dimension_numbers = #tpu.dot_dimension_numbers<[1], [1], [0], [0], [0, 0, 1, 0], [], []>} : vector<8x128xbf16>, vector<128x128xbf16>, vector<8x128xf32> -> vector<8x128xf32>
    %7 = arith.addf %3, %6 : vector<8x128xf32>
    %c0_6 = arith.constant 0 : index
    %c0_7 = arith.constant 0 : index
    %8 = vector.load %arg6[%c0_6, %c0_7] : memref<8x128xf32, #tpu.memory_space<vmem>>, vector<8x128xf32>
    tpu.vector_store %arg6[%c0_6, %c0_7], %7 {strides = array<i32>} : memref<8x128xf32, #tpu.memory_space<vmem>>, vector<8x128xf32>,
    %c0_i32_8 = arith.constant 0 : i32
    %9 = arith.cmpi eq, %arg2, %c0_i32_8 : i32
    %10 = arith.extui %9 : i1 to i32
    %c0_i32_9 = arith.constant 0 : i32
    %11 = arith.cmpi ne, %10, %c0_i32_9 : i32
    scf.if %11 {
      %c0_10 = arith.constant 0 : index
      %c0_11 = arith.constant 0 : index
      %12 = vector.load %arg6[%c0_10, %c0_11] : memref<8x128xf32, #tpu.memory_space<vmem>>, vector<8x128xf32>
      %c0_12 = arith.constant 0 : index
      %c0_13 = arith.constant 0 : index
      %13 = vector.load %arg5[%c0_12, %c0_13] : memref<1x128xf32, #tpu.memory_space<vmem>>, vector<1x128xf32>
      %14 = vector.broadcast %13 : vector<1x128xf32> to vector<8x128xf32>
      %15 = arith.addf %12, %14 : vector<8x128xf32>
      %cst_14 = arith.constant 0.000000e+00 : f32
      %16 = vector.broadcast %cst_14 : f32 to vector<8x128xf32>
      %17 = arith.maximumf %15, %16 : vector<8x128xf32>
      %c0_15 = arith.constant 0 : index
      %c0_16 = arith.constant 0 : index
      %18 = vector.load %arg6[%c0_15, %c0_16] : memref<8x128xf32, #tpu.memory_space<vmem>>, vector<8x128xf32>
      tpu.vector_store %arg6[%c0_15, %c0_16], %17 {strides = array<i32>} : memref<8x128xf32, #tpu.memory_space<vmem>>, vector<8x128xf32>,
    } else {
    }
    return
  }
  func.func @transform_0(%arg0: i32, %arg1: i32, %arg2: i32) -> (i32, i32) {
    %c0_i32 = arith.constant 0 : i32
    return %arg0, %arg2 : i32, i32
  }
  func.func @transform_1(%arg0: i32, %arg1: i32, %arg2: i32) -> (i32, i32) {
    %c0_i32 = arith.constant 0 : i32
    return %arg1, %arg2 : i32, i32
  }
  func.func @transform_2(%arg0: i32, %arg1: i32, %arg2: i32) -> (i32, i32) {
    %c0_i32 = arith.constant 0 : i32
    %c0_i32_0 = arith.constant 0 : i32
    return %c0_i32, %arg1 : i32, i32
  }
  func.func @transform_3(%arg0: i32, %arg1: i32, %arg2: i32) -> (i32, i32) {
    %c0_i32 = arith.constant 0 : i32
    return %arg0, %arg1 : i32, i32
  }
}

</mosaic_0001>

<llo_original>
// kernel: tpu_custom_call.1
$region0: #{tpu_custom_call.1}
  #allocation0 [shape = 'u32[]', space=smem, size = 0x4, offset = 0x4, fixed_abs, tag = 'smem constant byte address 0x4 - core index']
  #allocation1 [shape = 'u32[72,128]{1,0:T(1,128)}', space=vmem, size = 0x9000, scoped, tag = 'internal scratch']
  %s0 = inlined_call_operand.hbm [shape: bf16[8,128], index: 0, kind: input, shape index: {}]
  %s1 = inlined_call_operand.hbm [shape: bf16[128,128], index: 1, kind: input, shape index: {}]
  %s2 = inlined_call_operand.vmem [shape: f32[1,128], index: 2, kind: input, shape index: {}]
  %s3 = inlined_call_operand.hbm [shape: f32[8,128], index: 3, kind: output, shape index: {}]
  %s4 = sld [smem:[#allocation0]]
  $region38: #{tpu_custom_call.1} parent=0
    _
  %s6 = ssub.s32 1, %s4
  %s7 = scalar_select 0, %s6, %s4
  $region1: #{tpu_custom_call.1} parent=0
    #allocation2 [shape = 'u8[2048]{0}', space=vmem, size = 0x800, scoped, tag = 'input window, operand 0, single buffered']
    #allocation3 [shape = 's32[1]{0}', space=sflag, size = 0x4, scoped, tag = 'scoped memory for tpu_custom_call.1']
    #allocation4 [shape = 's32[1]{0}', space=sflag, size = 0x4, scoped, tag = 'scoped memory for tpu_custom_call.1']
    #allocation5 [shape = 'u8[32768]{0}', space=vmem, size = 0x8000, scoped, tag = 'input window, operand 1, single buffered']
    #allocation6 [shape = 's32[1]{0}', space=sflag, size = 0x4, scoped, tag = 'scoped memory for tpu_custom_call.1']
    #allocation7 [shape = 'u8[4096]{0}', space=vmem, size = 0x1000, scoped, tag = 'output window, operand 0, single buffered']
    %8 = vsyncpa [#allocation3], 0
    %9 = vsyncpa [#allocation6], 0
    %10 = vsyncpa [#allocation4], 0
    // Predicated region
    $region2: #{tpu_custom_call.1} parent=1 // pred_check
      _
    $region3: #{tpu_custom_call.1} parent=1 // pred_check_branch
      %12 = sbr.rel (0) target = $region5
    $region4: #{tpu_custom_call.1} parent=1 // pred_region
      %14 = vsyncadd [#allocation3], 0
      %s16 = sshll.u32 %s0, 4
      %s17 = int_to_ptr.hbm [resolvable:$true] %s16
      %s18 = sshll.u32 [#allocation2], 4
      %s19 = int_to_ptr.vmem [resolvable:$true] %s18
      %21 = dma.hbm_to_vmem [thread:$0]  %s17, 64, %s19, [#allocation3]
    $region5: #{tpu_custom_call.1} parent=1 // pred_fallthru
      _
    // Predicated region
    $region6: #{tpu_custom_call.1} parent=1 // pred_check
      _
    $region7: #{tpu_custom_call.1} parent=1 // pred_check_branch
      %23 = sbr.rel (0) target = $region9
    $region8: #{tpu_custom_call.1} parent=1 // pred_region
      %25 = vsyncadd [#allocation6], 0
      %s26 = sshll.u32 %s1, 4
      %s27 = int_to_ptr.hbm [resolvable:$true] %s26
      %s28 = sshll.u32 [#allocation5], 4
      %s29 = int_to_ptr.vmem [resolvable:$true] %s28
      %34 = dma.hbm_to_vmem [thread:$0]  %s27, 1024, %s29, [#allocation6], 64, 64, 4
    $region9: #{tpu_custom_call.1} parent=1 // pred_fallthru
      _
    // Predicated region
    $region10: #{tpu_custom_call.1} parent=1 // pred_check
      _
    $region11: #{tpu_custom_call.1} parent=1 // pred_check_branch
      %36 = sbr.rel (0) target = $region13
    $region12: #{tpu_custom_call.1} parent=1 // pred_region
      _
    $region13: #{tpu_custom_call.1} parent=1 // pred_fallthru
      _
    // Predicated region
    $region14: #{tpu_custom_call.1} parent=1 // pred_check
      _
    $region15: #{tpu_custom_call.1} parent=1 // pred_check_branch
      %38 = sbr.rel (0) target = $region17
    $region16: #{tpu_custom_call.1} parent=1 // pred_region
      %40 = dma.done [#allocation3], 64
    $region17: #{tpu_custom_call.1} parent=1 // pred_fallthru
      _
    // Predicated region
    $region18: #{tpu_custom_call.1} parent=1 // pred_check
      _
    $region19: #{tpu_custom_call.1} parent=1 // pred_check_branch
      %42 = sbr.rel (0) target = $region21
    $region20: #{tpu_custom_call.1} parent=1 // pred_region
      %44 = dma.done [#allocation6], 1024
    $region21: #{tpu_custom_call.1} parent=1 // pred_fallthru
      _
    %p45 = scmp.eq.s32.totalorder 0, 0
    // Predicated region
    $region22: #{tpu_custom_call.1} parent=1 // pred_check
      %p46 = pneg %p45
    $region23: #{tpu_custom_call.1} parent=1 // pred_check_branch
      %48 = sbr.rel (%p46) target = $region25
    $region24: #{tpu_custom_call.1} parent=1 // pred_region
      %49 = vst [vmem:[#allocation7] sm:$0xff] 0.0
    $region25: #{tpu_custom_call.1} parent=1 // pred_fallthru
      _
    %v50 = vld [vmem:[#allocation7] sm:$0xff]
    %v51 = vld [vmem:[#allocation2] sm:$0xf]
    %v52 = vld [vmem:[#allocation5] sm:$0xf]
    %v53 = vld [vmem:[#allocation5 + $0x4] sm:$0xf]
    %v54 = vld [vmem:[#allocation5 + $0x8] sm:$0xf]
    %v55 = vld [vmem:[#allocation5 + $0xc] sm:$0xf]
    %v56 = vld [vmem:[#allocation5 + $0x10] sm:$0xf]
    %v57 = vld [vmem:[#allocation5 + $0x14] sm:$0xf]
    %v58 = vld [vmem:[#allocation5 + $0x18] sm:$0xf]
    %v59 = vld [vmem:[#allocation5 + $0x1c] sm:$0xf]
    %v60 = vld [vmem:[#allocation5 + $0x20] sm:$0xf]
    %v61 = vld [vmem:[#allocation5 + $0x24] sm:$0xf]
    %v62 = vld [vmem:[#allocation5 + $0x28] sm:$0xf]
    %v63 = vld [vmem:[#allocation5 + $0x2c] sm:$0xf]
    %v64 = vld [vmem:[#allocation5 + $0x30] sm:$0xf]
    %v65 = vld [vmem:[#allocation5 + $0x34] sm:$0xf]
    %v66 = vld [vmem:[#allocation5 + $0x38] sm:$0xf]
    %v67 = vld [vmem:[#allocation5 + $0x3c] sm:$0xf]
    %v84 = vunpack.c.l.b16 %v52
    %v85 = vunpack.c.l.b16 %v53
    %v86 = vunpack.c.l.b16 %v54
    %v87 = vunpack.c.l.b16 %v55
    %v88 = vunpack.c.l.b16 %v56
    %v89 = vunpack.c.l.b16 %v57
    %v90 = vunpack.c.l.b16 %v58
    %v91 = vunpack.c.l.b16 %v59
    %v92 = vunpack.c.l.b16 %v60
    %v93 = vunpack.c.l.b16 %v61
    %v94 = vunpack.c.l.b16 %v62
    %v95 = vunpack.c.l.b16 %v63
    %v96 = vunpack.c.l.b16 %v64
    %v97 = vunpack.c.l.b16 %v65
    %v98 = vunpack.c.l.b16 %v66
    %v99 = vunpack.c.l.b16 %v67
    %v100 = vpack.c.b16 %v85, %v84
    %v101 = vpack.c.b16 %v87, %v86
    %v102 = vpack.c.b16 %v89, %v88
    %v103 = vpack.c.b16 %v91, %v90
    %v104 = vpack.c.b16 %v93, %v92
    %v105 = vpack.c.b16 %v95, %v94
    %v106 = vpack.c.b16 %v97, %v96
    %v107 = vpack.c.b16 %v99, %v98
    %116 = vmatpush.bf16.xpose.msra.mxu0 %v107
    %117 = vmatpush.bf16.xpose.msra.mxu0 %v106
    %118 = vmatpush.bf16.xpose.msra.mxu0 %v105
    %119 = vmatpush.bf16.xpose.msra.mxu0 %v104
    %120 = vmatpush.bf16.xpose.msra.mxu0 %v103
    %121 = vmatpush.bf16.xpose.msra.mxu0 %v102
    %122 = vmatpush.bf16.xpose.msra.mxu0 %v101
    %123 = vmatpush.bf16.xpose.msra.mxu0 %v100
    %124 = vmatmul.bf16.gmra.mxu0 %v51
    %v125 = vpop.f32.mrf.mxu0
    %v126 = vadd.f32 0.0, %v125
    %v127 = vpop.f32.mrf.mxu0
    %128 = vdwg.mxu0
    %v129 = vadd.f32 %v50, %v126
    %130 = vst [vmem:[#allocation7] sm:$0xff] %v129
    // Predicated region
    $region26: #{tpu_custom_call.1} parent=1 // pred_check
      %p131 = pneg %p45
    $region27: #{tpu_custom_call.1} parent=1 // pred_check_branch
      %133 = sbr.rel (%p131) target = $region29
    $region28: #{tpu_custom_call.1} parent=1 // pred_region
      %v134 = vld [vmem:[#allocation7] sm:$0xff]
      %v135 = vld [vmem:[%s2] sm:$0x1]
      %v137 = vperm.slane %v135, 0
      %v139 = vadd.f32 %v134, %v137
      %v140 = vmax.f32 %v139, 0.0
      %141 = vst [vmem:[#allocation7] sm:$0xff] %v140
    $region29: #{tpu_custom_call.1} parent=1 // pred_fallthru
      _
    // Predicated region
    $region30: #{tpu_custom_call.1} parent=1 // pred_check
      _
    $region31: #{tpu_custom_call.1} parent=1 // pred_check_branch
      %143 = sbr.rel (0) target = $region33
    $region32: #{tpu_custom_call.1} parent=1 // pred_region
      %145 = vsyncadd [#allocation4], 0
      %s147 = sshll.u32 [#allocation7], 4
      %s148 = int_to_ptr.vmem [resolvable:$true] %s147
      %s149 = sshll.u32 %s3, 4
      %s150 = int_to_ptr.hbm [resolvable:$true] %s149
      %152 = dma.vmem_to_hbm [thread:$0]  %s148, 128, %s150, [#allocation4]
    $region33: #{tpu_custom_call.1} parent=1 // pred_fallthru
      _
    // Predicated region
    $region34: #{tpu_custom_call.1} parent=1 // pred_check
      _
    $region35: #{tpu_custom_call.1} parent=1 // pred_check_branch
      %154 = sbr.rel (0) target = $region37
    $region36: #{tpu_custom_call.1} parent=1 // pred_region
      %156 = dma.done [#allocation4], 128
    $region37: #{tpu_custom_call.1} parent=1 // pred_fallthru
      _
    %157 = vsyncpa [#allocation3], 1
    %158 = vsyncpa [#allocation6], 1
    %159 = vsyncpa [#allocation4], 1

</llo_original>
